<compile_context>
chip_gen: v6e
topology: v6e:2x2x1
jax: 0.10.0
libtpu: 0.0.40
codegen_flags: <defaults>
</compile_context>

<pallas_src>
import functools
from typing import NamedTuple

import jax
import jax.numpy as jnp
from jax import lax
from jax.experimental import pallas as pl
from jax.experimental.pallas import tpu as pltpu


# --------------------------------------------------------------------------
# Helpers
# --------------------------------------------------------------------------
def _round_up(a, b):
    return ((a + b - 1) // b) * b


def _largest_tile(total, cap, quantum):
    """Largest multiple of `quantum` that divides `total` and is <= cap."""
    best = quantum
    d = quantum
    while d <= min(total, cap):
        if total % d == 0:
            best = d
        d += quantum
    return best


def _physical_vmem_bytes():
    try:
        info = pltpu.get_tpu_info()
        return int(getattr(info, "vmem_capacity_bytes", 64 * 1024 * 1024))
    except Exception:
        return 64 * 1024 * 1024  # conservative default (v7x per-core VMEM)


# --------------------------------------------------------------------------
# Kernels
# --------------------------------------------------------------------------
def _encoder_fused_kernel(x_ref, w_ref, b_ref, o_ref, *, compute_dtype):
    """Whole-K GEMM + bias + ReLU.  x:(tm,K)  w:(K,tn)  b:(1,tn)  o:(tm,tn)."""
    x = x_ref[...]
    w = w_ref[...]
    if compute_dtype is not None:
        x = x.astype(compute_dtype)
        w = w.astype(compute_dtype)
    acc = jnp.dot(x, w, preferred_element_type=jnp.float32)
    o_ref[...] = jnp.maximum(acc + b_ref[...], 0.0).astype(o_ref.dtype)


def _encoder_ktiled_kernel(x_ref, w_ref, b_ref, o_ref, acc_ref, *,
                           k_total, tk, compute_dtype):
    """K-tiled GEMM with f32 accumulator; bias + ReLU epilogue on last K step."""
    k = pl.program_id(2)

    @pl.when(k == 0)
    def _():
        acc_ref[...] = jnp.zeros_like(acc_ref)

    x = x_ref[...]
    if k_total % tk != 0:
        # x is NOT K-padded in HBM; zero the out-of-range tail columns of the
        # last K block (Pallas leaves out-of-bounds block contents undefined).
        col = lax.broadcasted_iota(jnp.int32, x.shape, 1)
        x = jnp.where(k * tk + col < k_total, x, jnp.zeros_like(x))
    w = w_ref[...]
    if compute_dtype is not None:
        x = x.astype(compute_dtype)
        w = w.astype(compute_dtype)

    acc_ref[...] += jnp.dot(x, w, preferred_element_type=jnp.float32)

    @pl.when(k == pl.num_programs(2) - 1)
    def _():
        o_ref[...] = jnp.maximum(acc_ref[...] + b_ref[...], 0.0).astype(o_ref.dtype)


# --------------------------------------------------------------------------
# One-time parameter prep (load time, NOT per forward call)
# --------------------------------------------------------------------------
class EncoderParams(NamedTuple):
    w_kn: jax.Array   # (Kp, Np): transposed, zero-padded, optionally bf16
    b_row: jax.Array  # (1, Np): f32
    n_out: int
    k_in: int


def prepare_params(weight, bias, *, compute_dtype=None):
    """weight: [num_dim, num_input] (PyTorch nn.Linear layout); bias: [num_dim]."""
    n_out, k_in = weight.shape
    kp = _round_up(k_in, 128)
    np_ = _round_up(n_out, 128)
    w_kn = jnp.transpose(weight)                       # [K, N]
    if compute_dtype is not None:
        w_kn = w_kn.astype(compute_dtype)
    w_kn = jnp.pad(w_kn, ((0, kp - k_in), (0, np_ - n_out)))
    b_row = jnp.pad(bias.astype(jnp.float32), (0, np_ - n_out)).reshape(1, np_)
    return EncoderParams(w_kn=w_kn, b_row=b_row, n_out=n_out, k_in=k_in)


# --------------------------------------------------------------------------
# Forward: relu(x @ W.T + b)
# --------------------------------------------------------------------------
def encoder_layer(x, params: EncoderParams, *, compute_dtype=None,
                  tm_max=512, tn_max=512, tk=None):
    """x: [B, num_input]; returns [B, num_dim]."""
    B, K = x.shape
    assert K == params.k_in, "input feature dim mismatch with prepared params"
    N = params.n_out
    Kp, Np = params.w_kn.shape

    x_ds = x.dtype.itemsize
    w_ds = params.w_kn.dtype.itemsize
    out_ds = x.dtype.itemsize

    phys_vmem = _physical_vmem_bytes()
    budget = max(32 * 1024 * 1024, int(phys_vmem * 0.6))

    # ----- tile selection --------------------------------------------------
    tm = min(tm_max, _round_up(B, 8))
    tn = _largest_tile(Np, tn_max, 128)

    def fused_footprint(tm_, tn_, kd_):
        return (2 * (tm_ * kd_ * x_ds + kd_ * tn_ * w_ds)
                + 2 * tm_ * tn_ * out_ds + Np * 4)

    def tiled_footprint(tm_, tn_, tk_):
        return (2 * (tm_ * tk_ * x_ds + tk_ * tn_ * w_ds)
                + 2 * tm_ * tn_ * out_ds + tm_ * tn_ * 4 + Np * 4)

    # Rows of W actually contracted in the fused path (multiple of 8, <= Kp).
    kd = K if K % 8 == 0 else _round_up(K, 8)
    want_fused = ((tk is None and fused_footprint(tm, tn, kd) <= budget)
                  or (tk is not None and tk >= Kp))

    if want_fused:
        # ---------- single-K-block path: no scratch, no pl.when -----------
        Mp = _round_up(B, tm)
        x_in = x
        if Mp != B or kd != K:
            # M tail pad (at most tm-1 rows) / tiny <8-column K pad only.
            x_in = jnp.pad(x, ((0, Mp - B), (0, kd - K)))
        gm, gn = Mp // tm, Np // tn
        # v7x has 2 TensorCores: keep >= 2 parallel tiles when N allows.
        if gm * gn == 1 and Np >= 256:
            tn = _largest_tile(Np, Np // 2, 128)
            gn = Np // tn

        grid = (gm, gn)
        kernel = functools.partial(_encoder_fused_kernel,
                                   compute_dtype=compute_dtype)
        in_specs = [
            pl.BlockSpec((tm, kd), lambda i, j: (i, 0)),   # x tile (full K)
            pl.BlockSpec((kd, tn), lambda i, j: (0, j)),   # W tile [K, N]
            pl.BlockSpec((1, tn), lambda i, j: (0, j)),    # bias tile
        ]
        out_specs = pl.BlockSpec((tm, tn), lambda i, j: (i, j))
        scratch = []
        dim_sem = ("parallel", "parallel")
        footprint = fused_footprint(tm, tn, kd)
    else:
        # ---------- K-tiled path with f32 accumulator ----------------------
        if tk is None:
            tk_ = _largest_tile(Kp, 1024, 128)
        else:
            tk_ = _largest_tile(Kp, max(int(tk), 128), 128)
        for _ in range(8):  # shrink until the working set fits the budget
            if tiled_footprint(tm, tn, tk_) <= budget:
                break
            if tk_ > 128:
                tk_ = _largest_tile(Kp, tk_ // 2, 128)
            elif tn > 128:
                tn = _largest_tile(Np, tn // 2, 128)
            elif tm > 8:
                tm = max(8, _round_up(tm // 2, 8))
            else:
                break

        Mp = _round_up(B, tm)
        x_in = x if Mp == B else jnp.pad(x, ((0, Mp - B), (0, 0)))
        gm, gn = Mp // tm, Np // tn
        if gm * gn == 1 and Np >= 256:          # v7x megacore
            tn = _largest_tile(Np, Np // 2, 128)
            gn = Np // tn
        gk = Kp // tk_

        grid = (gm, gn, gk)
        kernel = functools.partial(_encoder_ktiled_kernel,
                                   k_total=K, tk=tk_,
                                   compute_dtype=compute_dtype)
        in_specs = [
            pl.BlockSpec((tm, tk_), lambda i, j, k: (i, k)),  # x tile
            pl.BlockSpec((tk_, tn), lambda i, j, k: (k, j)),  # W tile [K, N]
            pl.BlockSpec((1, tn), lambda i, j, k: (0, j)),    # bias tile
        ]
        out_specs = pl.BlockSpec((tm, tn), lambda i, j, k: (i, j))
        scratch = [pltpu.VMEM((tm, tn), jnp.float32)]
        dim_sem = ("parallel", "parallel", "arbitrary")
        footprint = tiled_footprint(tm, tn, tk_)

    vmem_limit = int(min(phys_vmem * 3 // 4,
                         max(32 * 1024 * 1024, 2 * footprint)))

    # Cost estimate including cross-tile re-reads (advisory for XLA).
    gm_eff, gn_eff = grid[0], grid[1]
    flops = 2 * B * K * N
    bytes_accessed = int(gn_eff * B * K * x_ds + gm_eff * Kp * Np * w_ds
                         + B * N * out_ds + Np * 4)

    out_p = pl.pallas_call(
        kernel,
        out_shape=jax.ShapeDtypeStruct((Mp, Np), x.dtype),
        grid_spec=pltpu.PrefetchScalarGridSpec(
            num_scalar_prefetch=0,
            grid=grid,
            in_specs=in_specs,
            out_specs=out_specs,
            scratch_shapes=scratch,
        ),
        compiler_params=pltpu.CompilerParams(
            dimension_semantics=dim_sem,
            vmem_limit_bytes=vmem_limit,
        ),
        cost_estimate=pl.CostEstimate(
            flops=flops, transcendentals=0, bytes_accessed=bytes_accessed),
    )(x_in, params.w_kn, params.b_row)

    if Mp != B or Np != N:
        out_p = out_p[:B, :N]
    return out_p


# --------------------------------------------------------------------------
# Self-test
# --------------------------------------------------------------------------
if __name__ == "__main__":
    # Small shapes consistent with EncoderLayer(num_input=32, num_dim=64).
    batch, num_input, num_dim = 8, 32, 64
    key = jax.random.PRNGKey(0)
    kx, kw, kb = jax.random.split(key, 3)

    x = jax.random.normal(kx, (batch, num_input), dtype=jnp.float32)
    bound = 1.0 / (num_input ** 0.5)
    weight = jax.random.uniform(kw, (num_dim, num_input), jnp.float32, -bound, bound)
    bias = jax.random.uniform(kb, (num_dim,), jnp.float32, -bound, bound)

    ref = jnp.maximum(x @ weight.T + bias, 0.0)

    # 1) f32 path (exact nn.Linear + ReLU semantics), fused-K kernel.
    params_f32 = prepare_params(weight, bias)
    out = jax.block_until_ready(encoder_layer(x, params_f32))
    assert out.shape == (batch, num_dim)
    assert jnp.allclose(out, ref, atol=1e-5, rtol=1e-5)

    # 2) bf16 matmul inputs / f32 accumulation (MXU fast path).
    params_bf16 = prepare_params(weight, bias, compute_dtype=jnp.bfloat16)
    out_bf16 = jax.block_until_ready(
        encoder_layer(x, params_bf16, compute_dtype=jnp.bfloat16))
    assert out_bf16.shape == (batch, num_dim)
    assert jnp.allclose(out_bf16, ref, atol=5e-2, rtol=5e-2)

    # 3) K-tiled accumulator path (forced via tk < K) on a larger problem.
    b2, k2, n2 = 16, 384, 256
    kx2, kw2, kb2 = jax.random.split(jax.random.PRNGKey(1), 3)
    x2 = jax.random.normal(kx2, (b2, k2), dtype=jnp.float32)
    w2 = jax.random.normal(kw2, (n2, k2), dtype=jnp.float32) * (1.0 / k2 ** 0.5)
    bi2 = jax.random.normal(kb2, (n2,), dtype=jnp.float32)
    params2 = prepare_params(w2, bi2)
    out2 = jax.block_until_ready(encoder_layer(x2, params2, tk=128))
    ref2 = jnp.maximum(x2 @ w2.T + bi2, 0.0)
    assert out2.shape == (b2, n2)
    assert jnp.allclose(out2, ref2, atol=1e-4, rtol=1e-4)

    print("KERNEL_OK")
</pallas_src>

<mosaic_0001>
module attributes {stable_mosaic.version = 11 : i64} {
  func.func @_encoder_fused_kernel(%arg0: i32, %arg1: i32, %arg2: memref<8x32xf32, #tpu.memory_space<vmem>>, %arg3: memref<32x128xf32, #tpu.memory_space<vmem>>, %arg4: memref<1x128xf32, #tpu.memory_space<vmem>>, %arg5: memref<8x128xf32, #tpu.memory_space<vmem>>) attributes {dimension_semantics = [#tpu.dimension_semantics<parallel>, #tpu.dimension_semantics<parallel>], iteration_bounds = array<i64: 1, 1>, scalar_prefetch = 0 : i64, scratch_operands = 0 : i64, tpu.core_type = #tpu.core_type<tc>, window_params = [{transform_indices = @transform_0, window_bounds = array<i64: 8, 32>}, {transform_indices = @transform_1, window_bounds = array<i64: 32, 128>}, {transform_indices = @transform_2, window_bounds = array<i64: 1, 128>}, {transform_indices = @transform_3, window_bounds = array<i64: 8, 128>}]} {
    %c0 = arith.constant 0 : index
    %c0_0 = arith.constant 0 : index
    %0 = vector.load %arg2[%c0, %c0_0] : memref<8x32xf32, #tpu.memory_space<vmem>>, vector<8x32xf32>
    %c0_1 = arith.constant 0 : index
    %c0_2 = arith.constant 0 : index
    %1 = vector.load %arg3[%c0_1, %c0_2] : memref<32x128xf32, #tpu.memory_space<vmem>>, vector<32x128xf32>
    %cst = arith.constant dense<0.000000e+00> : vector<8x128xf32>
    %2 = tpu.matmul %0, %1, %cst {dimension_numbers = #tpu.dot_dimension_numbers<[1], [0], [0], [1], [0, 0, 1, 1], [], []>} : vector<8x32xf32>, vector<32x128xf32>, vector<8x128xf32> -> vector<8x128xf32>
    %c0_3 = arith.constant 0 : index
    %c0_4 = arith.constant 0 : index
    %3 = vector.load %arg4[%c0_3, %c0_4] : memref<1x128xf32, #tpu.memory_space<vmem>>, vector<1x128xf32>
    %4 = vector.broadcast %3 : vector<1x128xf32> to vector<8x128xf32>
    %5 = arith.addf %2, %4 : vector<8x128xf32>
    %cst_5 = arith.constant 0.000000e+00 : f32
    %6 = vector.broadcast %cst_5 : f32 to vector<8x128xf32>
    %7 = arith.maximumf %5, %6 : vector<8x128xf32>
    %c0_6 = arith.constant 0 : index
    %c0_7 = arith.constant 0 : index
    %8 = vector.load %arg5[%c0_6, %c0_7] : memref<8x128xf32, #tpu.memory_space<vmem>>, vector<8x128xf32>
    tpu.vector_store %arg5[%c0_6, %c0_7], %7 {strides = array<i32>} : memref<8x128xf32, #tpu.memory_space<vmem>>, vector<8x128xf32>,
    return
  }
  func.func @transform_0(%arg0: i32, %arg1: i32) -> (i32, i32) {
    %c0_i32 = arith.constant 0 : i32
    %c0_i32_0 = arith.constant 0 : i32
    return %arg0, %c0_i32 : i32, i32
  }
  func.func @transform_1(%arg0: i32, %arg1: i32) -> (i32, i32) {
    %c0_i32 = arith.constant 0 : i32
    %c0_i32_0 = arith.constant 0 : i32
    return %c0_i32, %arg1 : i32, i32
  }
  func.func @transform_2(%arg0: i32, %arg1: i32) -> (i32, i32) {
    %c0_i32 = arith.constant 0 : i32
    %c0_i32_0 = arith.constant 0 : i32
    return %c0_i32, %arg1 : i32, i32
  }
  func.func @transform_3(%arg0: i32, %arg1: i32) -> (i32, i32) {
    %c0_i32 = arith.constant 0 : i32
    return %arg0, %arg1 : i32, i32
  }
}

</mosaic_0001>

<llo_original>
// kernel: tpu_custom_call.1
$region0: #{tpu_custom_call.1}
  #allocation0 [shape = 'u32[]', space=smem, size = 0x4, offset = 0x4, fixed_abs, tag = 'smem constant byte address 0x4 - core index']
  #allocation1 [shape = 'u32[144,128]{1,0:T(1,128)}', space=vmem, size = 0x12000, scoped, tag = 'internal scratch']
  %s0 = inlined_call_operand.hbm [shape: f32[8,32], index: 0, kind: input, shape index: {}]
  %s1 = inlined_call_operand.hbm [shape: f32[128,128], index: 1, kind: input, shape index: {}]
  %s2 = inlined_call_operand.vmem [shape: f32[1,128], index: 2, kind: input, shape index: {}]
  %s3 = inlined_call_operand.hbm [shape: f32[8,128], index: 3, kind: output, shape index: {}]
  %s4 = sld [smem:[#allocation0]]
  $region30: #{tpu_custom_call.1} parent=0
    _
  %s6 = ssub.s32 1, %s4
  %s7 = scalar_select 0, %s6, %s4
  $region1: #{tpu_custom_call.1} parent=0
    #allocation2 [shape = 'u8[4096]{0}', space=vmem, size = 0x1000, scoped, tag = 'input window, operand 0, single buffered']
    #allocation3 [shape = 's32[1]{0}', space=sflag, size = 0x4, scoped, tag = 'scoped memory for tpu_custom_call.1']
    #allocation4 [shape = 's32[1]{0}', space=sflag, size = 0x4, scoped, tag = 'scoped memory for tpu_custom_call.1']
    #allocation5 [shape = 'u8[16384]{0}', space=vmem, size = 0x4000, scoped, tag = 'input window, operand 1, single buffered']
    #allocation6 [shape = 's32[1]{0}', space=sflag, size = 0x4, scoped, tag = 'scoped memory for tpu_custom_call.1']
    #allocation7 [shape = 'u8[4096]{0}', space=vmem, size = 0x1000, scoped, tag = 'output window, operand 0, single buffered']
    %8 = vsyncpa [#allocation3], 0
    %9 = vsyncpa [#allocation6], 0
    %10 = vsyncpa [#allocation4], 0
    // Predicated region
    $region2: #{tpu_custom_call.1} parent=1 // pred_check
      _
    $region3: #{tpu_custom_call.1} parent=1 // pred_check_branch
      %12 = sbr.rel (0) target = $region5
    $region4: #{tpu_custom_call.1} parent=1 // pred_region
      %s14 = ssub.s32 128, 128
      %15 = vsyncadd [#allocation3], %s14
      %s17 = sshll.u32 [#allocation2], 4
      %s18 = int_to_ptr.vmem [resolvable:$true] %s17
      %20 = dma.hbm_to_vmem [thread:$0]  %s0, 128, %s18, [#allocation3]
    $region5: #{tpu_custom_call.1} parent=1 // pred_fallthru
      _
    // Predicated region
    $region6: #{tpu_custom_call.1} parent=1 // pred_check
      _
    $region7: #{tpu_custom_call.1} parent=1 // pred_check_branch
      %22 = sbr.rel (0) target = $region9
    $region8: #{tpu_custom_call.1} parent=1 // pred_region
      %s24 = ssub.s32 512, 512
      %25 = vsyncadd [#allocation6], %s24
      %s26 = sshll.u32 [#allocation5], 4
      %s27 = int_to_ptr.vmem [resolvable:$true] %s26
      %32 = dma.hbm_to_vmem [thread:$0]  %s1, 512, %s27, [#allocation6], 128, 128, 8
    $region9: #{tpu_custom_call.1} parent=1 // pred_fallthru
      _
    // Predicated region
    $region10: #{tpu_custom_call.1} parent=1 // pred_check
      _
    $region11: #{tpu_custom_call.1} parent=1 // pred_check_branch
      %34 = sbr.rel (0) target = $region13
    $region12: #{tpu_custom_call.1} parent=1 // pred_region
      _
    $region13: #{tpu_custom_call.1} parent=1 // pred_fallthru
      _
    // Predicated region
    $region14: #{tpu_custom_call.1} parent=1 // pred_check
      _
    $region15: #{tpu_custom_call.1} parent=1 // pred_check_branch
      %36 = sbr.rel (0) target = $region17
    $region16: #{tpu_custom_call.1} parent=1 // pred_region
      %37 = dma.done [#allocation3], 128
    $region17: #{tpu_custom_call.1} parent=1 // pred_fallthru
      _
    // Predicated region
    $region18: #{tpu_custom_call.1} parent=1 // pred_check
      _
    $region19: #{tpu_custom_call.1} parent=1 // pred_check_branch
      %39 = sbr.rel (0) target = $region21
    $region20: #{tpu_custom_call.1} parent=1 // pred_region
      %40 = dma.done [#allocation6], 512
    $region21: #{tpu_custom_call.1} parent=1 // pred_fallthru
      _
    %v41 = vld [vmem:[#allocation2] sm:$0xff]
    %v42 = vld [vmem:[#allocation5] sm:$0xff]
    %v43 = vld [vmem:[#allocation5 + $0x8] sm:$0xff]
    %v44 = vld [vmem:[#allocation5 + $0x10] sm:$0xff]
    %v45 = vld [vmem:[#allocation5 + $0x18] sm:$0xff]
    %v46 = vld [vmem:[%s2] sm:$0x1]
    %v48 = vlaneseq
    %v49 = vshrl.u32 %v48, 7
    %v50 = vsub.s32 0, %v49
    %v51 = vrot.slane %v46, %v50
    %vm53 = vcmask 261120
    %v55 = vsel %vm53, %v41, 0
    %57 = vmatprep.subr.mxu0 0.0
    %58 = vmatpush1.msra.mxu0 0.0
    %59 = vmatprep.subr.mxu0 0.0
    %60 = vmatpush1.msra.mxu0 0.0
    %61 = vmatprep.subr.mxu0 0.0
    %62 = vmatpush1.msra.mxu0 0.0
    %63 = vmatprep.subr.mxu0 0.0
    %64 = vmatpush1.msra.mxu0 0.0
    %65 = vmatprep.subr.mxu0 0.0
    %66 = vmatpush1.msra.mxu0 0.0
    %67 = vmatprep.subr.mxu0 0.0
    %68 = vmatpush1.msra.mxu0 0.0
    %69 = vmatprep.subr.mxu0 0.0
    %70 = vmatpush1.msra.mxu0 0.0
    %71 = vmatprep.subr.mxu0 0.0
    %72 = vmatpush1.msra.mxu0 0.0
    %73 = vmatprep.subr.mxu0 0.0
    %74 = vmatpush1.msra.mxu0 0.0
    %75 = vmatprep.subr.mxu0 0.0
    %76 = vmatpush1.msra.mxu0 0.0
    %77 = vmatprep.subr.mxu0 0.0
    %78 = vmatpush1.msra.mxu0 0.0
    %79 = vmatprep.subr.mxu0 0.0
    %80 = vmatpush1.msra.mxu0 0.0
    %81 = vmatprep.subr.mxu0 0.0
    %82 = vmatpush1.msra.mxu0 %v45
    %83 = vmatprep.subr.mxu0 0.0
    %84 = vmatpush1.msra.mxu0 %v44
    %85 = vmatprep.subr.mxu0 0.0
    %86 = vmatpush1.msra.mxu0 %v43
    %87 = vmatprep.subr.mxu0 0.0
    %88 = vmatpush1.msra.mxu0 %v42
    %89 = vmatprep.subr.mxu0 0.0
    %90 = vmatpush2.msra.mxu0 0.0
    %91 = vmatprep.subr.mxu0 0.0
    %92 = vmatpush2.msra.mxu0 0.0
    %93 = vmatprep.subr.mxu0 0.0
    %94 = vmatpush2.msra.mxu0 0.0
    %95 = vmatprep.subr.mxu0 0.0
    %96 = vmatpush2.msra.mxu0 0.0
    %97 = vmatprep.subr.mxu0 0.0
    %98 = vmatpush2.msra.mxu0 0.0
    %99 = vmatprep.subr.mxu0 0.0
    %100 = vmatpush2.msra.mxu0 0.0
    %101 = vmatprep.subr.mxu0 0.0
    %102 = vmatpush2.msra.mxu0 0.0
    %103 = vmatprep.subr.mxu0 0.0
    %104 = vmatpush2.msra.mxu0 0.0
    %105 = vmatprep.subr.mxu0 0.0
    %106 = vmatpush2.msra.mxu0 0.0
    %107 = vmatprep.subr.mxu0 0.0
    %108 = vmatpush2.msra.mxu0 0.0
    %109 = vmatprep.subr.mxu0 0.0
    %110 = vmatpush2.msra.mxu0 0.0
    %111 = vmatprep.subr.mxu0 0.0
    %112 = vmatpush2.msra.mxu0 0.0
    %113 = vmatprep.subr.mxu0 0.0
    %114 = vmatpush2.msra.mxu0 0.0
    %115 = vmatprep.subr.mxu0 0.0
    %116 = vmatpush2.msra.mxu0 0.0
    %117 = vmatprep.subr.mxu0 0.0
    %118 = vmatpush2.msra.mxu0 0.0
    %119 = vmatprep.subr.mxu0 0.0
    %120 = vmatpush2.msra.mxu0 0.0
    %121 = vmatprep.mubr.f32.mxu0 0.0
    %122 = vmatmul.mubr.f32.gmra.mxu0 %v55
    %v123 = vpop.f32.mrf.mxu0
    %v124 = vadd.f32 %v51, %v123
    %v125 = vpop.f32.mrf.mxu0
    %126 = vdwg.mxu0
    %v127 = vmax.f32 %v124, 0.0
    %128 = vst [vmem:[#allocation7] sm:$0xff] %v127
    // Predicated region
    $region22: #{tpu_custom_call.1} parent=1 // pred_check
      _
    $region23: #{tpu_custom_call.1} parent=1 // pred_check_branch
      %130 = sbr.rel (0) target = $region25
    $region24: #{tpu_custom_call.1} parent=1 // pred_region
      %s132 = ssub.s32 128, 128
      %133 = vsyncadd [#allocation4], %s132
      %s135 = sshll.u32 [#allocation7], 4
      %s136 = int_to_ptr.vmem [resolvable:$true] %s135
      %138 = dma.vmem_to_hbm [thread:$0]  %s136, 128, %s3, [#allocation4]
    $region25: #{tpu_custom_call.1} parent=1 // pred_fallthru
      _
    // Predicated region
    $region26: #{tpu_custom_call.1} parent=1 // pred_check
      _
    $region27: #{tpu_custom_call.1} parent=1 // pred_check_branch
      %140 = sbr.rel (0) target = $region29
    $region28: #{tpu_custom_call.1} parent=1 // pred_region
      %141 = dma.done [#allocation4], 128
    $region29: #{tpu_custom_call.1} parent=1 // pred_fallthru
      _
    %142 = vsyncpa [#allocation3], 1
    %143 = vsyncpa [#allocation6], 1
    %144 = vsyncpa [#allocation4], 1

</llo_original>
